<compile_context>
chip_gen: v7x
topology: tpu7x:2x2x1
jax: 0.10.0
libtpu: 0.0.40
codegen_flags: <defaults>
</compile_context>

<pallas_src>
import functools

import jax
import jax.numpy as jnp
from jax.experimental import pallas as pl
from jax.experimental.pallas import tpu as pltpu


# ---------------------------------------------------------------------------
# helpers
# ---------------------------------------------------------------------------
def _round_up(v, m):
    return ((v + m - 1) // m) * m


def _vmem_capacity_bytes():
    try:
        return int(pltpu.get_tpu_info().vmem_capacity_bytes)
    except Exception:
        return 64 * 1024 * 1024  # conservative fallback: v7x per-TC VMEM


# ---------------------------------------------------------------------------
# Pass 1: global average pool (channel squeeze) -- per-(b, c) sums over the
# flattened spatial axis, tiled along N, split into P parallel partial sums.
# ---------------------------------------------------------------------------
def _gap_sum_kernel(x_ref, sum_ref, *, rem, n_tiles, tiles_per_p, num_p):
    p = pl.program_id(1)
    n = pl.program_id(2)
    tile_idx = p * tiles_per_p + n

    @pl.when(n == 0)
    def _():
        sum_ref[...] = jnp.zeros_like(sum_ref)

    def _accumulate(mask_tail):
        x = x_ref[0].astype(jnp.float32)                  # (C, TN), f32 accum
        if mask_tail:
            col = jax.lax.broadcasted_iota(jnp.int32, x.shape, 1)
            x = jnp.where(col < rem, x, 0.0)
        sum_ref[0] = sum_ref[0] + jnp.sum(x, axis=1, keepdims=True)   # (C, 1)

    exact_grid = (tiles_per_p * num_p == n_tiles)

    if rem == 0 and exact_grid:
        # Fast path: every grid step maps to a full, valid tile.
        _accumulate(False)
    elif rem == 0:
        @pl.when(tile_idx < n_tiles)
        def _():
            _accumulate(False)
    else:
        # Unmasked fast path for all but the ragged last tile.
        @pl.when(tile_idx < n_tiles - 1)
        def _():
            _accumulate(False)

        @pl.when(tile_idx == n_tiles - 1)
        def _():
            _accumulate(True)


# ---------------------------------------------------------------------------
# Pass 2: fused sSE gate + cSE gate + elementwise max-combine (single x pass).
# ---------------------------------------------------------------------------
def _cs_se_kernel(x_ref, w_ref, gc_ref, b_ref, o_ref, *, use_mxu):
    x = x_ref[0]                                          # (C, TN), native dtype
    bias = b_ref[0]                                       # scalar conv bias (SMEM)

    if use_mxu:
        # Spatial squeeze as one MXU matmul (1, C) @ (C, TN), f32 accumulation.
        s = jax.lax.dot_general(
            w_ref[...].astype(x.dtype), x,
            dimension_numbers=(((1,), (0,)), ((), ())),
            preferred_element_type=jnp.float32,
            precision=jax.lax.Precision.HIGHEST)          # (1, TN) f32
    else:
        # C < sublane width: a single vectorized multiply + sublane reduce is
        # cheaper than padding the MXU contraction.
        s = jnp.sum(x.astype(jnp.float32) * w_ref[...].astype(jnp.float32),
                    axis=0, keepdims=True)                # (1, TN) f32

    gate_s = jax.nn.sigmoid(s + bias).astype(x.dtype)     # (1, TN), exp on EUP
    gate_c = gc_ref[0].astype(x.dtype)                    # (C, 1)

    # cSE / sSE applications and max in the streamed tile's native dtype.
    o_ref[0] = jnp.maximum(x * gate_c, x * gate_s).astype(o_ref.dtype)


def channel_spatial_se_3d(x, conv_w, conv_b, fc1_w, fc1_b, fc2_w, fc2_b):
    """
    x:      (B, C, D, H, W)
    conv_w: (1, C, 1, 1, 1)   Conv3d(C, 1, 1) weight     conv_b: (1,)
    fc1_w:  (C//r, C)         fc1_b: (C//r,)
    fc2_w:  (C, C//r)         fc2_b: (C,)
    returns (B, C, D, H, W)
    """
    B, C, D, H, W = x.shape
    N = D * H * W
    x_flat = x.reshape(B, C, N)
    itemsize = jnp.dtype(x.dtype).itemsize

    # ---- Byte-targeted, lane-dense spatial tile + explicit VMEM budget. ----
    vmem_cap = _vmem_capacity_bytes()
    target_tile_bytes = max(512 * 1024, min(2 * 1024 * 1024, vmem_cap // 32))
    row_bytes = max(1, C * itemsize)
    tn = (target_tile_bytes // row_bytes) // 128 * 128
    tn = max(128, min(tn, 16384))
    if tn < 512 and 512 * row_bytes <= 2 * target_tile_bytes:
        tn = 512                                  # prefer >=512 lanes when cheap
    tn = min(tn, _round_up(N, 128))
    n_tiles = pl.cdiv(N, tn)
    rem = N % tn
    tile_bytes = C * tn * itemsize
    vmem_limit = int(min(vmem_cap * 3 // 4,
                         max(32 * 1024 * 1024, 12 * tile_bytes)))

    # ---- Pass-1 parallel split of the N reduction (megacore on v7x even for
    #      small B): P partial sums over disjoint tile ranges. ----
    if B >= 4 or n_tiles == 1:
        P = 1
    else:
        P = min(n_tiles, pl.cdiv(4, B))
    tiles_per_p = pl.cdiv(n_tiles, P)

    if tiles_per_p * P == n_tiles:
        x1_idx = lambda b, p, n: (b, 0, p * tiles_per_p + n)
    else:
        x1_idx = lambda b, p, n: (b, 0,
                                  jnp.minimum(p * tiles_per_p + n, n_tiles - 1))

    cost1 = pl.CostEstimate(
        flops=B * C * N, transcendentals=0,
        bytes_accessed=B * C * N * itemsize + P * B * C * 4)

    sums = pl.pallas_call(
        functools.partial(_gap_sum_kernel, rem=rem, n_tiles=n_tiles,
                          tiles_per_p=tiles_per_p, num_p=P),
        out_shape=jax.ShapeDtypeStruct((P * B, C, 1), jnp.float32),
        grid_spec=pltpu.PrefetchScalarGridSpec(
            num_scalar_prefetch=0,
            grid=(B, P, tiles_per_p),
            in_specs=[pl.BlockSpec((1, C, tn), x1_idx)],
            out_specs=pl.BlockSpec((1, C, 1), lambda b, p, n: (p * B + b, 0, 0)),
        ),
        compiler_params=pltpu.CompilerParams(
            dimension_semantics=("parallel", "parallel", "arbitrary"),
            vmem_limit_bytes=vmem_limit),
        cost_estimate=cost1,
    )(x_flat)

    # ---- cSE excitation MLP: tiny (B, C) matmuls, done in plain JAX. ----
    means = sums.reshape(P, B, C).sum(axis=0) * (1.0 / N)            # (B, C)
    h1 = jax.nn.relu(means @ fc1_w.T.astype(jnp.float32)
                     + fc1_b.astype(jnp.float32))
    gate_c = jax.nn.sigmoid(h1 @ fc2_w.T.astype(jnp.float32)
                            + fc2_b.astype(jnp.float32))
    gate_c = gate_c.astype(jnp.float32).reshape(B, C, 1)

    use_mxu = C >= 8
    if use_mxu:
        w_arr = conv_w.reshape(1, C).astype(jnp.float32)
    else:
        w_arr = conv_w.reshape(C, 1).astype(jnp.float32)
    bias = conv_b.reshape(1).astype(jnp.float32)

    cost2 = pl.CostEstimate(
        flops=5 * B * C * N, transcendentals=B * N,
        bytes_accessed=2 * B * C * N * itemsize + B * C * 4)

    # ---- Fused sSE gate + apply both gates + max-combine (single x pass). ----
    out_flat = pl.pallas_call(
        functools.partial(_cs_se_kernel, use_mxu=use_mxu),
        out_shape=jax.ShapeDtypeStruct((B, C, N), x.dtype),
        grid_spec=pltpu.PrefetchScalarGridSpec(
            num_scalar_prefetch=0,
            grid=(B, n_tiles),
            in_specs=[
                pl.BlockSpec((1, C, tn), lambda b, n: (b, 0, n)),      # x tile
                pl.BlockSpec(w_arr.shape, lambda b, n: (0, 0)),        # conv weight
                pl.BlockSpec((1, C, 1), lambda b, n: (b, 0, 0)),       # channel gate
                pl.BlockSpec(memory_space=pltpu.MemorySpace.SMEM),     # conv bias
            ],
            out_specs=pl.BlockSpec((1, C, tn), lambda b, n: (b, 0, n)),
        ),
        compiler_params=pltpu.CompilerParams(
            dimension_semantics=("parallel", "parallel"),
            vmem_limit_bytes=vmem_limit),
        cost_estimate=cost2,
    )(x_flat, w_arr, gate_c, bias)

    return out_flat.reshape(B, C, D, H, W)


if __name__ == "__main__":
    key = jax.random.PRNGKey(0)
    keys = jax.random.split(key, 7)

    B, C, D, H, W = 2, 4, 8, 8, 8
    reduction = 2
    Cr = C // reduction

    x = jax.random.normal(keys[0], (B, C, D, H, W), dtype=jnp.float32)
    conv_w = jax.random.normal(keys[1], (1, C, 1, 1, 1), dtype=jnp.float32) * 0.5
    conv_b = jax.random.normal(keys[2], (1,), dtype=jnp.float32) * 0.1
    fc1_w = jax.random.normal(keys[3], (Cr, C), dtype=jnp.float32) * 0.5
    fc1_b = jax.random.normal(keys[4], (Cr,), dtype=jnp.float32) * 0.1
    fc2_w = jax.random.normal(keys[5], (C, Cr), dtype=jnp.float32) * 0.5
    fc2_b = jax.random.normal(keys[6], (C,), dtype=jnp.float32) * 0.1

    y = channel_spatial_se_3d(x, conv_w, conv_b, fc1_w, fc1_b, fc2_w, fc2_b)
    y = jax.block_until_ready(y)

    # Pure-JAX reference (matches the PyTorch forward).
    mean = jnp.mean(x, axis=(2, 3, 4))                                  # (B, C)
    h1 = jax.nn.relu(mean @ fc1_w.T + fc1_b)
    gc = jax.nn.sigmoid(h1 @ fc2_w.T + fc2_b)                           # (B, C)
    cse_ref = x * gc[:, :, None, None, None]
    gs = jax.nn.sigmoid(
        jnp.einsum("bcdhw,c->bdhw", x, conv_w.reshape(C)) + conv_b[0])
    sse_ref = x * gs[:, None, :, :, :]
    y_ref = jnp.maximum(cse_ref, sse_ref)

    assert y.shape == (B, C, D, H, W)
    assert jnp.allclose(y, y_ref, atol=1e-5, rtol=1e-5), "mismatch vs reference"

    print("KERNEL_OK")
</pallas_src>

<mosaic_0001>
module attributes {stable_mosaic.version = 11 : i64} {
  func.func @_gap_sum_kernel(%arg0: i32, %arg1: i32, %arg2: i32, %arg3: memref<1x4x512xf32, #tpu.memory_space<vmem>>, %arg4: memref<1x4x1xf32, #tpu.memory_space<vmem>>) attributes {dimension_semantics = [#tpu.dimension_semantics<parallel>, #tpu.dimension_semantics<parallel>, #tpu.dimension_semantics<arbitrary>], iteration_bounds = array<i64: 2, 1, 1>, scalar_prefetch = 0 : i64, scratch_operands = 0 : i64, tpu.core_type = #tpu.core_type<tc>, window_params = [{transform_indices = @transform_0, window_bounds = array<i64: 1, 4, 512>}, {transform_indices = @transform_1, window_bounds = array<i64: 1, 4, 1>}]} {
    %c0_i32 = arith.constant 0 : i32
    %0 = arith.cmpi eq, %arg2, %c0_i32 : i32
    %1 = arith.extui %0 : i1 to i32
    %c0_i32_0 = arith.constant 0 : i32
    %2 = arith.cmpi ne, %1, %c0_i32_0 : i32
    scf.if %2 {
      %cst_9 = arith.constant 0.000000e+00 : f32
      %13 = vector.broadcast %cst_9 : f32 to vector<1x4x1xf32>
      %c0_10 = arith.constant 0 : index
      %c0_11 = arith.constant 0 : index
      %c0_12 = arith.constant 0 : index
      %14 = vector.load %arg4[%c0_10, %c0_11, %c0_12] : memref<1x4x1xf32, #tpu.memory_space<vmem>>, vector<1x4x1xf32>
      tpu.vector_store %arg4[%c0_10, %c0_11, %c0_12], %13 {strides = array<i32>} : memref<1x4x1xf32, #tpu.memory_space<vmem>>, vector<1x4x1xf32>,
    } else {
    }
    %c0 = arith.constant 0 : index
    %c0_1 = arith.constant 0 : index
    %c0_2 = arith.constant 0 : index
    %3 = vector.load %arg3[%c0, %c0_1, %c0_2] : memref<1x4x512xf32, #tpu.memory_space<vmem>>, vector<1x4x512xf32>
    %4 = vector.shape_cast %3 : vector<1x4x512xf32> to vector<4x512xf32>
    %c0_3 = arith.constant 0 : index
    %c0_4 = arith.constant 0 : index
    %c0_5 = arith.constant 0 : index
    %5 = vector.load %arg4[%c0_3, %c0_4, %c0_5] : memref<1x4x1xf32, #tpu.memory_space<vmem>>, vector<1x4x1xf32>
    %6 = vector.shape_cast %5 : vector<1x4x1xf32> to vector<4x1xf32>
    %cst = arith.constant dense<0.000000e+00> : vector<4xf32>
    %7 = vector.multi_reduction <add>, %4, %cst [1] : vector<4x512xf32> to vector<4xf32>
    %8 = vector.shape_cast %7 : vector<4xf32> to vector<4x1xf32>
    %9 = arith.addf %6, %8 : vector<4x1xf32>
    %c0_6 = arith.constant 0 : index
    %c0_7 = arith.constant 0 : index
    %c0_8 = arith.constant 0 : index
    %10 = vector.load %arg4[%c0_6, %c0_7, %c0_8] : memref<1x4x1xf32, #tpu.memory_space<vmem>>, vector<1x4x1xf32>
    %11 = vector.shape_cast %10 : vector<1x4x1xf32> to vector<4x1xf32>
    %12 = vector.shape_cast %9 : vector<4x1xf32> to vector<1x4x1xf32>
    tpu.vector_store %arg4[%c0_6, %c0_7, %c0_8], %12 {strides = array<i32>} : memref<1x4x1xf32, #tpu.memory_space<vmem>>, vector<1x4x1xf32>,
    return
  }
  func.func @transform_0(%arg0: i32, %arg1: i32, %arg2: i32) -> (i32, i32, i32) {
    %c1_i32 = arith.constant 1 : i32
    %0 = arith.muli %arg1, %c1_i32 : i32
    %1 = arith.addi %0, %arg2 : i32
    %c0_i32 = arith.constant 0 : i32
    %c0_i32_0 = arith.constant 0 : i32
    return %arg0, %c0_i32, %1 : i32, i32, i32
  }
  func.func @transform_1(%arg0: i32, %arg1: i32, %arg2: i32) -> (i32, i32, i32) {
    %c2_i32 = arith.constant 2 : i32
    %0 = arith.muli %arg1, %c2_i32 : i32
    %1 = arith.addi %0, %arg0 : i32
    %c0_i32 = arith.constant 0 : i32
    %c0_i32_0 = arith.constant 0 : i32
    %c0_i32_1 = arith.constant 0 : i32
    return %1, %c0_i32, %c0_i32_0 : i32, i32, i32
  }
}

</mosaic_0001>

<llo_original>
// kernel: tpu_custom_call.1
$region0: #{tpu_custom_call.1}
  #allocation0 [shape = 'u32[]', space=smem, size = 0x4, offset = 0x4, fixed_abs, tag = 'smem constant byte address 0x4 - core index']
  #allocation1 [shape = 'u32[144,128]{1,0:T(1,128)}', space=vmem, size = 0x12000, scoped, tag = 'internal scratch']
  %s0 = inlined_call_operand.hbm [shape: f32[2,4,512], index: 0, kind: input, shape index: {}]
  %s1 = inlined_call_operand.vmem [shape: f32[2,4,1], index: 1, kind: output, shape index: {}]
  %s2 = sld [smem:[#allocation0]]
  $region45: #{tpu_custom_call.1} parent=0
    _
  %s4 = ssub.s32 1, %s2
  %s5 = scalar_select 0, %s4, %s2
  $region1: #{tpu_custom_call.1} parent=0
    #allocation2 [shape = 'u8[16384]{0}', space=vmem, size = 0x4000, scoped, tag = 'input window, operand 0']
    #allocation3 [shape = 's32[2]{0}', space=sflag, size = 0x8, scoped, tag = 'scoped memory for tpu_custom_call.1']
    %6 = vsyncpa [#allocation3], 0
    %s7 = scalar_lea.sflag [#allocation3], 1
    %8 = vsyncpa %s7, 0
    loop: start=0, step=1, limit=4
    $region2: #{tpu_custom_call.1} parent=1 // loop_pre_header
      _
    $region3: #{tpu_custom_call.1} parent=1 // loop_header
      %s10 = sphi 0, %s14
      %p11 = scmp.ge.s32.totalorder %s10, 4
      %s17 = sphi 0, %s36
      %s18 = sphi 0, %s32
      %s19 = sphi 0, %s28
      %s20 = sphi 0, %s17
      %s21 = sphi 0, %s18
      %s22 = sphi 0, %s19
      %s23 = sphi 0, %s20
      %s24 = sphi 0, %s21
      %s25 = sphi 0, %s22
      %s43 = sphi 0, %s45
      %s46 = sphi 0, %s43
      %s47 = sphi 0, %s46
      %s63 = sphi 0, %s47
      %s73 = sphi 0, %s75
      %s76 = sphi 0, %s73
      %s77 = sphi 0, %s76
      %s93 = sphi 0, %s77
    $region4: #{tpu_custom_call.1} parent=1 // loop_header_branch
      %13 = sbr.rel (%p11) target = $region8
    $region5: #{tpu_custom_call.1} parent=1 // loop_body
      %s15 = ssub.s32 %s10, 1
      %s16 = ssub.s32 %s10, 2
      %s26 = sadd.s32 1, %s19
      %p27 = scmp.ge.s32.totalorder %s26, 1
      %s28 = scalar_select %p27, 0, %s26
      %s29 = sadd.s32 1, %s18
      %s30 = scalar_select %p27, %s29, %s18
      %p31 = scmp.ge.s32.totalorder %s30, 1
      %s32 = scalar_select %p31, 0, %s30
      %s33 = sadd.s32 1, %s17
      %s34 = scalar_select %p31, %s33, %s17
      %p35 = scmp.ge.s32.totalorder %s34, 2
      %s36 = scalar_select %p35, 0, %s34
      %s37 = sadd.s32 %s18, %s19
      %s38 = sadd.s32 %s32, %s28
      %s39 = ssub.s32 %s17, %s36
      %s40 = ssub.s32 %s37, %s38
      %s41 = sor.u32 %s39, %s40
      %p42 = scmp.eq.s32.totalorder %s41, 0
      %s44 = sadd.s32 %s43, 1
      %s45 = scalar_select %p42, %s43, %s44
      %p48 = pneg %p42
      %p49 = scmp.eq.s32.totalorder %s10, 1
      %p50 = por %p48, %p49
      %p51 = scmp.ne.s32.totalorder %s43, %s46
      %p52 = scmp.eq.s32.totalorder %s10, 0
      %p53 = por %p51, %p52
      %p54 = scmp.ne.s32.totalorder %s43, %s46
      %p55 = scmp.eq.s32.totalorder %s15, 1
      %p56 = por %p54, %p55
      %p57 = scmp.ne.s32.totalorder %s46, %s47
      %p58 = scmp.eq.s32.totalorder %s15, 0
      %p59 = por %p57, %p58
      %p60 = scmp.ne.s32.totalorder %s46, %s47
      %p61 = scmp.eq.s32.totalorder %s16, 1
      %p62 = por %p60, %p61
      %p64 = scmp.ne.s32.totalorder %s47, %s63
      %p65 = scmp.eq.s32.totalorder %s16, 0
      %p66 = por %p64, %p65
      %s67 = smul.u32 %s18, 2
      %s68 = sadd.s32 %s67, %s17
      %s69 = smul.u32 %s32, 2
      %s70 = sadd.s32 %s69, %s36
      %s71 = ssub.s32 %s68, %s70
      %p72 = scmp.eq.s32.totalorder %s71, 0
      %s74 = sadd.s32 %s73, 1
      %s75 = scalar_select %p72, %s73, %s74
      %p78 = pneg %p72
      %p79 = scmp.eq.s32.totalorder %s10, 1
      %p80 = por %p78, %p79
      %p81 = scmp.ne.s32.totalorder %s73, %s76
      %p82 = scmp.eq.s32.totalorder %s10, 0
      %p83 = por %p81, %p82
      %p84 = scmp.ne.s32.totalorder %s73, %s76
      %p85 = scmp.eq.s32.totalorder %s15, 1
      %p86 = por %p84, %p85
      %p87 = scmp.ne.s32.totalorder %s76, %s77
      %p88 = scmp.eq.s32.totalorder %s15, 0
      %p89 = por %p87, %p88
      %p90 = scmp.ne.s32.totalorder %s76, %s77
      %p91 = scmp.eq.s32.totalorder %s16, 1
      %p92 = por %p90, %p91
      %p94 = scmp.ne.s32.totalorder %s77, %s93
      %p95 = scmp.eq.s32.totalorder %s16, 0
      %p96 = por %p94, %p95
      %p97 = scmp.le.s32.totalorder 1, %s10
      %p98 = scmp.lt.s32.totalorder %s10, 3
      %p99 = pnand %p97, %p98
      %p100 = pneg %p99
      // Predicated region
      $region9: #{tpu_custom_call.1} parent=5 // pred_check
        _
      $region10: #{tpu_custom_call.1} parent=5 // pred_check_branch
        %102 = sbr.rel (%p99) target = $region12
      $region11: #{tpu_custom_call.1} parent=5 // pred_region
        %s103 = ssub.s32 %s10, 1
      $region12: #{tpu_custom_call.1} parent=5 // pred_fallthru
        _
      %p104 = scmp.lt.s32.totalorder %s10, 2
      // Predicated region
      $region13: #{tpu_custom_call.1} parent=5 // pred_check
        %p105 = pneg %p104
      $region14: #{tpu_custom_call.1} parent=5 // pred_check_branch
        %107 = sbr.rel (%p105) target = $region16
      $region15: #{tpu_custom_call.1} parent=5 // pred_region
        // Predicated region
        $region17: #{tpu_custom_call.1} parent=15 // pred_check
          %p108 = pneg %p53
        $region18: #{tpu_custom_call.1} parent=15 // pred_check_branch
          %110 = sbr.rel (%p108) target = $region20
        $region19: #{tpu_custom_call.1} parent=15 // pred_region
          %s111 = sand.u32 %s43, 1
          %s112 = scalar_lea.sflag [#allocation3], %s111
          %s113 = sand.u32 %s43, 1
          %s114 = smul.addr %s113, 16
          %s115 = scalar_lea.vmem [#allocation2], %s114
          %s116 = sadd.s32 %s18, %s19
          %s117 = smul.u32 4, %s116
          %s119 = ssub.s32 256, 256
          %120 = vsyncadd %s112, %s119
          %s121 = smul.addr %s17, 4
          %s122 = sadd.s32 %s117, %s121
          %s123 = smul.addr %s122, 64
          %s124 = scalar_lea.hbm %s0, %s123
          %s126 = sshll.u32 %s115, 4
          %s127 = int_to_ptr.vmem [resolvable:$true] %s126
          %129 = dma.hbm_to_vmem [thread:$0]  %s124, 256, %s127, %s112
        $region20: #{tpu_custom_call.1} parent=15 // pred_fallthru
          _
      $region16: #{tpu_custom_call.1} parent=5 // pred_fallthru
        _
      %p130 = scmp.le.s32.totalorder 1, %s10
      %p131 = scmp.lt.s32.totalorder %s10, 3
      %p132 = pnand %p130, %p131
      %p133 = pneg %p132
      // Predicated region
      $region21: #{tpu_custom_call.1} parent=5 // pred_check
        _
      $region22: #{tpu_custom_call.1} parent=5 // pred_check_branch
        %135 = sbr.rel (%p132) target = $region24
      $region23: #{tpu_custom_call.1} parent=5 // pred_region
        %s136 = ssub.s32 %s10, 1
        %s137 = sand.u32 %s46, 1
        %s138 = scalar_lea.sflag [#allocation3], %s137
        %s139 = sand.u32 %s46, 1
        %s140 = smul.addr %s139, 16
        %s141 = scalar_lea.vmem [#allocation2], %s140
        // Predicated region
        $region25: #{tpu_custom_call.1} parent=23 // pred_check
          %p142 = pneg %p59
        $region26: #{tpu_custom_call.1} parent=23 // pred_check_branch
          %144 = sbr.rel (%p142) target = $region28
        $region27: #{tpu_custom_call.1} parent=23 // pred_region
          %145 = dma.done %s138, 256
        $region28: #{tpu_custom_call.1} parent=23 // pred_fallthru
          _
        %s146 = sand.u32 %s46, 1
        %s147 = scalar_lea.sflag [#allocation3], %s146
        %s148 = sand.u32 %s46, 1
        %s149 = smul.addr %s148, 16
        %s150 = scalar_lea.vmem [#allocation2], %s149
        %p151 = pneg %p59
        %p152 = pneg %p56
        %p153 = pneg %p89
        %p154 = pneg %p86
        %s155 = smul.u32 %s21, 2
        %s156 = sadd.s32 %s155, %s20
        %p157 = scmp.lt.s32.totalorder %s156, 1
        %s158 = scalar_select %p157, %s156, 1
        %s159 = smul.addr %s158, 4
        %s160 = scalar_lea.vmem %s1, %s159
        %s161 = sadd.s32 %s21, %s22
        %s162 = smul.u32 4, %s161
        %s163 = smul.u32 %s21, 2
        %s164 = sadd.s32 %s163, %s20
        %p165 = scmp.lt.s32.totalorder %s164, 1
        %s166 = scalar_select %p165, %s164, 1
        %s167 = smul.addr %s166, 4
        %s168 = scalar_lea.vmem %s1, %s167
        %s169 = smul.u32 %s21, 2
        %s170 = sadd.s32 %s169, %s20
        %p171 = scmp.eq.s32.totalorder %s22, 0
        // Predicated region
        $region29: #{tpu_custom_call.1} parent=23 // pred_check
          %p172 = pneg %p171
        $region30: #{tpu_custom_call.1} parent=23 // pred_check_branch
          %174 = sbr.rel (%p172) target = $region32
        $region31: #{tpu_custom_call.1} parent=23 // pred_region
          %vm175 = vcmask 3072
          %176 = vst.msk [vmem:[%s168] sm:$0xf] %vm175, 0.0
        $region32: #{tpu_custom_call.1} parent=23 // pred_fallthru
          _
        %v177 = vld [vmem:[%s141] sm:$0xff]
        %v178 = vld [vmem:[%s141 + $0x8] sm:$0xff]
        %v179 = vld [vmem:[%s168] sm:$0xf]
        %v182 = vcombine.high %v177, %v177
        %v183 = vcombine.high %v178, %v178
        %vm186 = vcmask 1043456
        %v187 = vsel %vm186, %v177, 0.0
        %v188 = vsel %vm186, %v182, 0.0
        %v189 = vadd.f32 %v187, %v188
        %v190 = vsel %vm186, %v178, 0.0
        %v191 = vadd.f32 %v189, %v190
        %v192 = vsel %vm186, %v183, 0.0
        %v193 = vadd.f32 %v191, %v192
        %194 = vadd.xlane.f32.xlu0 %v193
        %v195 = vpop.xlane.xlu0 %194
        %v196 = vadd.f32 %v179, %v195
        %vm197 = vcmask 3072
        %198 = vst.msk [vmem:[%s168] sm:$0xf] %vm197, %v196
        %s199 = smul.u32 %s21, 2
        %s200 = sadd.s32 %s199, %s20
        %p201 = scmp.lt.s32.totalorder %s200, 1
        %s202 = scalar_select %p201, %s200, 1
        %s203 = smul.addr %s202, 4
        %s204 = scalar_lea.vmem %s1, %s203
        // Predicated region
        $region33: #{tpu_custom_call.1} parent=23 // pred_check
          %p205 = pneg %p86
        $region34: #{tpu_custom_call.1} parent=23 // pred_check_branch
          %207 = sbr.rel (%p205) target = $region36
        $region35: #{tpu_custom_call.1} parent=23 // pred_region
          %s208 = smul.u32 %s21, 2
          %s209 = sadd.s32 %s208, %s20
        $region36: #{tpu_custom_call.1} parent=23 // pred_fallthru
          _
      $region24: #{tpu_custom_call.1} parent=5 // pred_fallthru
        _
      %p210 = scmp.le.s32.totalorder 2, %s10
      // Predicated region
      $region37: #{tpu_custom_call.1} parent=5 // pred_check
        %p211 = pneg %p210
      $region38: #{tpu_custom_call.1} parent=5 // pred_check_branch
        %213 = sbr.rel (%p211) target = $region40
      $region39: #{tpu_custom_call.1} parent=5 // pred_region
        %s214 = ssub.s32 %s10, 2
        // Predicated region
        $region41: #{tpu_custom_call.1} parent=39 // pred_check
          %p215 = pneg %p92
        $region42: #{tpu_custom_call.1} parent=39 // pred_check_branch
          %217 = sbr.rel (%p215) target = $region44
        $region43: #{tpu_custom_call.1} parent=39 // pred_region
          %s218 = smul.u32 %s24, 2
          %s219 = sadd.s32 %s218, %s23
          %p220 = scmp.lt.s32.totalorder %s219, 1
          %s221 = scalar_select %p220, %s219, 1
          %s222 = smul.addr %s221, 4
          %s223 = scalar_lea.vmem %s1, %s222
        $region44: #{tpu_custom_call.1} parent=39 // pred_fallthru
          _
      $region40: #{tpu_custom_call.1} parent=5 // pred_fallthru
        _
    $region6: #{tpu_custom_call.1} parent=1 // loop_footer
      %s14 = sadd.s32 1, %s10
    $region7: #{tpu_custom_call.1} parent=1 // loop_footer_branch
      %9 = sbr.rel target = $region3
    $region8: #{tpu_custom_call.1} parent=1 // loop_exit
      _
    %224 = vsyncpa [#allocation3], 1
    %s225 = scalar_lea.sflag [#allocation3], 1
    %226 = vsyncpa %s225, 1

</llo_original>
